<compile_context>
chip_gen: v7x
topology: tpu7x:2x2x1
jax: 0.10.0
libtpu: 0.0.40
codegen_flags: <defaults>
</compile_context>

<pallas_src>
import jax
import jax.numpy as jnp
from jax.experimental import pallas as pl
from jax.experimental.pallas import tpu as pltpu

SUB = 8          # sublane granularity (padding granularity only)
LANE = 128       # lane width
TILE_ROWS = 512  # rows of 128 lanes per grid step (256 KiB f32 per tile)


def _round_up(a, b):
    return ((a + b - 1) // b) * b


def _qmodel_kernel(u_ref, x_ref, o_ref):
    # u_ref: SMEM (12,) f32.  Per layer l, u[4l:4l+4] = [a_re, a_im, b_re, b_im] of the
    #        fused unitary U_l = RZ(rz1)·RY(ry0)·RZ(rz0) = [[a, -conj(b)], [b, conj(a)]].
    # x_ref: VMEM (tile_rows, 128) f32 encoder angles; o_ref: same shape, qout.
    x = x_ref[...]
    h = x * 0.5
    cx = jnp.cos(h)
    sx = jnp.sin(h)

    # --- layer 0: RY(x)|0> = (cx, 0, sx, 0); apply U0 exploiting the zero imaginary parts
    ar, ai, br, bi = u_ref[0], u_ref[1], u_ref[2], u_ref[3]
    re0 = ar * cx - br * sx
    im0 = ai * cx + bi * sx
    re1 = br * cx + ar * sx
    im1 = bi * cx - ai * sx

    # --- layer 1: RY(x), then full complex 2x2 U1
    re0, im0, re1, im1 = (cx * re0 - sx * re1, cx * im0 - sx * im1,
                          sx * re0 + cx * re1, sx * im0 + cx * im1)
    ar, ai, br, bi = u_ref[4], u_ref[5], u_ref[6], u_ref[7]
    n0r = ar * re0 - ai * im0 - br * re1 - bi * im1
    n0i = ar * im0 + ai * re0 - br * im1 + bi * re1
    n1r = br * re0 - bi * im0 + ar * re1 + ai * im1
    n1i = br * im0 + bi * re0 + ar * im1 - ai * re1
    re0, im0, re1, im1 = n0r, n0i, n1r, n1i

    # --- layer 2: RY(x), then only the |0> row of U2 (output needs amp0 only)
    re0, im0, re1, im1 = (cx * re0 - sx * re1, cx * im0 - sx * im1,
                          sx * re0 + cx * re1, sx * im0 + cx * im1)
    ar, ai, br, bi = u_ref[8], u_ref[9], u_ref[10], u_ref[11]
    f0r = ar * re0 - ai * im0 - br * re1 - bi * im1
    f0i = ar * im0 + ai * re0 - br * im1 + bi * re1

    # State is normalized (unitary circuit from |0>), so (<Z>+1)/2 == |amp0|^2.
    o_ref[...] = f0r * f0r + f0i * f0i


def q_model_multi_qubit_forward(x, params):
    """x: any shape (flattened like the module's x.view(-1, 1)).
    params: (9,) f32 trainable angles = (rz0, ry0, rz1) for each of the 3 layers.
    Returns (N, 1) f32 with N = x.size."""
    x = jnp.asarray(x, jnp.float32)
    n = x.size
    xf = x.reshape(-1)

    # ---- choose tile size so the grid divides exactly and (for small inputs) has >=2
    #      parallel steps (keeps both v7x TensorCores busy; neutral on v5e/v6e).
    rows_needed = max(1, _round_up(n, LANE) // LANE)
    if rows_needed >= 2 * TILE_ROWS:
        tile_rows = TILE_ROWS
    else:
        tile_rows = max(SUB, _round_up(max(rows_needed // 2, 1), SUB))
    rows = _round_up(rows_needed, tile_rows)
    n_pad = rows * LANE
    if n_pad != n:                       # Python-level branch: no pad op when aligned
        xf = jnp.pad(xf, (0, n_pad - n))
    x2 = xf.reshape(rows, LANE)
    num_steps = rows // tile_rows

    # ---- fuse each RZ(p0)·RY(p1)·RZ(p2) into one SU(2) matrix [[a,-b*],[b,a*]]
    p = jnp.asarray(params, jnp.float32).reshape(3, 3)   # rows: (rz0, ry0, rz1)
    alpha = p[:, 0] * 0.5
    beta = p[:, 1] * 0.5
    gamma = p[:, 2] * 0.5
    cb, sb = jnp.cos(beta), jnp.sin(beta)
    a_re = cb * jnp.cos(alpha + gamma)
    a_im = -cb * jnp.sin(alpha + gamma)
    b_re = sb * jnp.cos(alpha - gamma)
    b_im = -sb * jnp.sin(alpha - gamma)
    u = jnp.stack([a_re, a_im, b_re, b_im], axis=1).reshape(-1).astype(jnp.float32)  # (12,)

    out = pl.pallas_call(
        _qmodel_kernel,
        out_shape=jax.ShapeDtypeStruct((rows, LANE), jnp.float32),
        grid=(num_steps,),
        in_specs=[
            pl.BlockSpec(memory_space=pltpu.SMEM),               # fused params (whole)
            pl.BlockSpec((tile_rows, LANE), lambda i: (i, 0)),    # x tile
        ],
        out_specs=pl.BlockSpec((tile_rows, LANE), lambda i: (i, 0)),
        compiler_params=pltpu.CompilerParams(
            dimension_semantics=("parallel",)),
        cost_estimate=pl.CostEstimate(
            flops=90 * n_pad, transcendentals=2 * n_pad, bytes_accessed=8 * n_pad),
    )(u, x2)

    flat = out.reshape(-1)
    if n_pad != n:                       # Python-level branch: no slice op when aligned
        flat = flat[:n]
    return flat.reshape(n, 1)


def _reference_forward(x, params):
    """Independent plain-JAX reference built from explicit 2x2 complex gate matrices
    (torchquantum conventions: RY(t)=[[c,-s],[s,c]], RZ(t)=diag(e^{-it/2}, e^{it/2})).
    Shares no math/code with the kernel (validates gate conventions + fusion)."""
    theta = jnp.asarray(x, jnp.float32).reshape(-1)
    p = jnp.asarray(params, jnp.float32)
    n = theta.shape[0]

    def ry_batched(t):                                   # (n,) -> (n,2,2) complex
        c = jnp.cos(t / 2).astype(jnp.complex64)
        s = jnp.sin(t / 2).astype(jnp.complex64)
        return jnp.stack([jnp.stack([c, -s], -1), jnp.stack([s, c], -1)], -2)

    def ry(t):                                           # scalar -> (2,2)
        c = jnp.cos(t / 2).astype(jnp.complex64)
        s = jnp.sin(t / 2).astype(jnp.complex64)
        return jnp.stack([jnp.stack([c, -s]), jnp.stack([s, c])])

    def rz(t):                                           # scalar -> (2,2)
        e = jnp.exp(-0.5j * t.astype(jnp.complex64))
        z = jnp.zeros((), jnp.complex64)
        return jnp.stack([jnp.stack([e, z]), jnp.stack([z, jnp.conj(e)])])

    state = jnp.zeros((n, 2), jnp.complex64).at[:, 0].set(1.0)
    enc = ry_batched(theta)
    for layer in range(3):
        state = jnp.einsum("nij,nj->ni", enc, state)                 # encoder RY(x)
        for gate_fn, idx in ((rz, 0), (ry, 1), (rz, 2)):             # rz0, ry0, rz1
            m = gate_fn(p[3 * layer + idx])
            state = jnp.einsum("ij,nj->ni", m, state)
    z = jnp.abs(state[:, 0]) ** 2 - jnp.abs(state[:, 1]) ** 2        # <PauliZ>
    return ((z + 1.0) * 0.5).astype(jnp.float32).reshape(n, 1)


if __name__ == "__main__":
    key = jax.random.PRNGKey(0)
    kx, kp = jax.random.split(key)

    # NCHW-style input consistent with the module's x.view(-1, 1) semantics.
    x = jax.random.normal(kx, (2, 4, 16, 16), dtype=jnp.float32)
    # 9 trainable rotation angles: (rz0, ry0, rz1) for q_layer, q_layer1, q_layer2.
    params = jax.random.uniform(kp, (9,), minval=-jnp.pi, maxval=jnp.pi,
                                dtype=jnp.float32)

    fwd = jax.jit(q_model_multi_qubit_forward)
    out = fwd(x, params)
    out = jax.block_until_ready(out)

    ref = _reference_forward(x, params)
    assert out.shape == (x.size, 1)
    assert jnp.allclose(out, ref, atol=1e-5), "mismatch vs independent matrix reference"

    print("KERNEL_OK")
</pallas_src>

<mosaic_0001>
module attributes {stable_mosaic.version = 11 : i64} {
  func.func @_qmodel_kernel(%arg0: i32, %arg1: memref<12xf32, #tpu.memory_space<smem>>, %arg2: memref<8x128xf32, #tpu.memory_space<vmem>>, %arg3: memref<8x128xf32, #tpu.memory_space<vmem>>) attributes {dimension_semantics = [#tpu.dimension_semantics<parallel>], iteration_bounds = array<i64: 2>, scalar_prefetch = 0 : i64, scratch_operands = 0 : i64, tpu.core_type = #tpu.core_type<tc>, window_params = [{transform_indices = @transform_0, window_bounds = array<i64: 12>}, {transform_indices = @transform_1, window_bounds = array<i64: 8, 128>}, {transform_indices = @transform_2, window_bounds = array<i64: 8, 128>}]} {
    %c0 = arith.constant 0 : index
    %c0_0 = arith.constant 0 : index
    %0 = vector.load %arg2[%c0, %c0_0] : memref<8x128xf32, #tpu.memory_space<vmem>>, vector<8x128xf32>
    %cst = arith.constant 5.000000e-01 : f32
    %1 = vector.broadcast %cst : f32 to vector<8x128xf32>
    %2 = arith.mulf %0, %1 : vector<8x128xf32>
    %3 = math.cos %2 : vector<8x128xf32>
    %4 = math.sin %2 : vector<8x128xf32>
    %c0_1 = arith.constant 0 : index
    %5 = memref.load %arg1[%c0_1] : memref<12xf32, #tpu.memory_space<smem>>
    %c1 = arith.constant 1 : index
    %6 = memref.load %arg1[%c1] : memref<12xf32, #tpu.memory_space<smem>>
    %c2 = arith.constant 2 : index
    %7 = memref.load %arg1[%c2] : memref<12xf32, #tpu.memory_space<smem>>
    %c3 = arith.constant 3 : index
    %8 = memref.load %arg1[%c3] : memref<12xf32, #tpu.memory_space<smem>>
    %9 = vector.broadcast %5 : f32 to vector<8x128xf32>
    %10 = arith.mulf %9, %3 : vector<8x128xf32>
    %11 = vector.broadcast %7 : f32 to vector<8x128xf32>
    %12 = arith.mulf %11, %4 : vector<8x128xf32>
    %13 = arith.subf %10, %12 : vector<8x128xf32>
    %14 = vector.broadcast %6 : f32 to vector<8x128xf32>
    %15 = arith.mulf %14, %3 : vector<8x128xf32>
    %16 = vector.broadcast %8 : f32 to vector<8x128xf32>
    %17 = arith.mulf %16, %4 : vector<8x128xf32>
    %18 = arith.addf %15, %17 : vector<8x128xf32>
    %19 = vector.broadcast %7 : f32 to vector<8x128xf32>
    %20 = arith.mulf %19, %3 : vector<8x128xf32>
    %21 = vector.broadcast %5 : f32 to vector<8x128xf32>
    %22 = arith.mulf %21, %4 : vector<8x128xf32>
    %23 = arith.addf %20, %22 : vector<8x128xf32>
    %24 = vector.broadcast %8 : f32 to vector<8x128xf32>
    %25 = arith.mulf %24, %3 : vector<8x128xf32>
    %26 = vector.broadcast %6 : f32 to vector<8x128xf32>
    %27 = arith.mulf %26, %4 : vector<8x128xf32>
    %28 = arith.subf %25, %27 : vector<8x128xf32>
    %29 = arith.mulf %3, %13 : vector<8x128xf32>
    %30 = arith.mulf %4, %23 : vector<8x128xf32>
    %31 = arith.subf %29, %30 : vector<8x128xf32>
    %32 = arith.mulf %3, %18 : vector<8x128xf32>
    %33 = arith.mulf %4, %28 : vector<8x128xf32>
    %34 = arith.subf %32, %33 : vector<8x128xf32>
    %35 = arith.mulf %4, %13 : vector<8x128xf32>
    %36 = arith.mulf %3, %23 : vector<8x128xf32>
    %37 = arith.addf %35, %36 : vector<8x128xf32>
    %38 = arith.mulf %4, %18 : vector<8x128xf32>
    %39 = arith.mulf %3, %28 : vector<8x128xf32>
    %40 = arith.addf %38, %39 : vector<8x128xf32>
    %c4 = arith.constant 4 : index
    %41 = memref.load %arg1[%c4] : memref<12xf32, #tpu.memory_space<smem>>
    %c5 = arith.constant 5 : index
    %42 = memref.load %arg1[%c5] : memref<12xf32, #tpu.memory_space<smem>>
    %c6 = arith.constant 6 : index
    %43 = memref.load %arg1[%c6] : memref<12xf32, #tpu.memory_space<smem>>
    %c7 = arith.constant 7 : index
    %44 = memref.load %arg1[%c7] : memref<12xf32, #tpu.memory_space<smem>>
    %45 = vector.broadcast %41 : f32 to vector<8x128xf32>
    %46 = arith.mulf %45, %31 : vector<8x128xf32>
    %47 = vector.broadcast %42 : f32 to vector<8x128xf32>
    %48 = arith.mulf %47, %34 : vector<8x128xf32>
    %49 = arith.subf %46, %48 : vector<8x128xf32>
    %50 = vector.broadcast %43 : f32 to vector<8x128xf32>
    %51 = arith.mulf %50, %37 : vector<8x128xf32>
    %52 = arith.subf %49, %51 : vector<8x128xf32>
    %53 = vector.broadcast %44 : f32 to vector<8x128xf32>
    %54 = arith.mulf %53, %40 : vector<8x128xf32>
    %55 = arith.subf %52, %54 : vector<8x128xf32>
    %56 = vector.broadcast %41 : f32 to vector<8x128xf32>
    %57 = arith.mulf %56, %34 : vector<8x128xf32>
    %58 = vector.broadcast %42 : f32 to vector<8x128xf32>
    %59 = arith.mulf %58, %31 : vector<8x128xf32>
    %60 = arith.addf %57, %59 : vector<8x128xf32>
    %61 = vector.broadcast %43 : f32 to vector<8x128xf32>
    %62 = arith.mulf %61, %40 : vector<8x128xf32>
    %63 = arith.subf %60, %62 : vector<8x128xf32>
    %64 = vector.broadcast %44 : f32 to vector<8x128xf32>
    %65 = arith.mulf %64, %37 : vector<8x128xf32>
    %66 = arith.addf %63, %65 : vector<8x128xf32>
    %67 = vector.broadcast %43 : f32 to vector<8x128xf32>
    %68 = arith.mulf %67, %31 : vector<8x128xf32>
    %69 = vector.broadcast %44 : f32 to vector<8x128xf32>
    %70 = arith.mulf %69, %34 : vector<8x128xf32>
    %71 = arith.subf %68, %70 : vector<8x128xf32>
    %72 = vector.broadcast %41 : f32 to vector<8x128xf32>
    %73 = arith.mulf %72, %37 : vector<8x128xf32>
    %74 = arith.addf %71, %73 : vector<8x128xf32>
    %75 = vector.broadcast %42 : f32 to vector<8x128xf32>
    %76 = arith.mulf %75, %40 : vector<8x128xf32>
    %77 = arith.addf %74, %76 : vector<8x128xf32>
    %78 = vector.broadcast %43 : f32 to vector<8x128xf32>
    %79 = arith.mulf %78, %34 : vector<8x128xf32>
    %80 = vector.broadcast %44 : f32 to vector<8x128xf32>
    %81 = arith.mulf %80, %31 : vector<8x128xf32>
    %82 = arith.addf %79, %81 : vector<8x128xf32>
    %83 = vector.broadcast %41 : f32 to vector<8x128xf32>
    %84 = arith.mulf %83, %40 : vector<8x128xf32>
    %85 = arith.addf %82, %84 : vector<8x128xf32>
    %86 = vector.broadcast %42 : f32 to vector<8x128xf32>
    %87 = arith.mulf %86, %37 : vector<8x128xf32>
    %88 = arith.subf %85, %87 : vector<8x128xf32>
    %89 = arith.mulf %3, %55 : vector<8x128xf32>
    %90 = arith.mulf %4, %77 : vector<8x128xf32>
    %91 = arith.subf %89, %90 : vector<8x128xf32>
    %92 = arith.mulf %3, %66 : vector<8x128xf32>
    %93 = arith.mulf %4, %88 : vector<8x128xf32>
    %94 = arith.subf %92, %93 : vector<8x128xf32>
    %95 = arith.mulf %4, %55 : vector<8x128xf32>
    %96 = arith.mulf %3, %77 : vector<8x128xf32>
    %97 = arith.addf %95, %96 : vector<8x128xf32>
    %98 = arith.mulf %4, %66 : vector<8x128xf32>
    %99 = arith.mulf %3, %88 : vector<8x128xf32>
    %100 = arith.addf %98, %99 : vector<8x128xf32>
    %c8 = arith.constant 8 : index
    %101 = memref.load %arg1[%c8] : memref<12xf32, #tpu.memory_space<smem>>
    %c9 = arith.constant 9 : index
    %102 = memref.load %arg1[%c9] : memref<12xf32, #tpu.memory_space<smem>>
    %c10 = arith.constant 10 : index
    %103 = memref.load %arg1[%c10] : memref<12xf32, #tpu.memory_space<smem>>
    %c11 = arith.constant 11 : index
    %104 = memref.load %arg1[%c11] : memref<12xf32, #tpu.memory_space<smem>>
    %105 = vector.broadcast %101 : f32 to vector<8x128xf32>
    %106 = arith.mulf %105, %91 : vector<8x128xf32>
    %107 = vector.broadcast %102 : f32 to vector<8x128xf32>
    %108 = arith.mulf %107, %94 : vector<8x128xf32>
    %109 = arith.subf %106, %108 : vector<8x128xf32>
    %110 = vector.broadcast %103 : f32 to vector<8x128xf32>
    %111 = arith.mulf %110, %97 : vector<8x128xf32>
    %112 = arith.subf %109, %111 : vector<8x128xf32>
    %113 = vector.broadcast %104 : f32 to vector<8x128xf32>
    %114 = arith.mulf %113, %100 : vector<8x128xf32>
    %115 = arith.subf %112, %114 : vector<8x128xf32>
    %116 = vector.broadcast %101 : f32 to vector<8x128xf32>
    %117 = arith.mulf %116, %94 : vector<8x128xf32>
    %118 = vector.broadcast %102 : f32 to vector<8x128xf32>
    %119 = arith.mulf %118, %91 : vector<8x128xf32>
    %120 = arith.addf %117, %119 : vector<8x128xf32>
    %121 = vector.broadcast %103 : f32 to vector<8x128xf32>
    %122 = arith.mulf %121, %100 : vector<8x128xf32>
    %123 = arith.subf %120, %122 : vector<8x128xf32>
    %124 = vector.broadcast %104 : f32 to vector<8x128xf32>
    %125 = arith.mulf %124, %97 : vector<8x128xf32>
    %126 = arith.addf %123, %125 : vector<8x128xf32>
    %127 = arith.mulf %115, %115 : vector<8x128xf32>
    %128 = arith.mulf %126, %126 : vector<8x128xf32>
    %129 = arith.addf %127, %128 : vector<8x128xf32>
    %c0_2 = arith.constant 0 : index
    %c0_3 = arith.constant 0 : index
    %130 = vector.load %arg3[%c0_2, %c0_3] : memref<8x128xf32, #tpu.memory_space<vmem>>, vector<8x128xf32>
    tpu.vector_store %arg3[%c0_2, %c0_3], %129 {strides = array<i32>} : memref<8x128xf32, #tpu.memory_space<vmem>>, vector<8x128xf32>,
    return
  }
  func.func @transform_0(%arg0: i32) -> i32 {
    %c0_i32 = arith.constant 0 : i32
    %c0_i32_0 = arith.constant 0 : i32
    return %c0_i32 : i32
  }
  func.func @transform_1(%arg0: i32) -> (i32, i32) {
    %c0_i32 = arith.constant 0 : i32
    %c0_i32_0 = arith.constant 0 : i32
    return %arg0, %c0_i32 : i32, i32
  }
  func.func @transform_2(%arg0: i32) -> (i32, i32) {
    %c0_i32 = arith.constant 0 : i32
    %c0_i32_0 = arith.constant 0 : i32
    return %arg0, %c0_i32 : i32, i32
  }
}

</mosaic_0001>

<llo_original>
// kernel: q_model_multi_qubit_forward.1
$region0: #{q_model_multi_qubit_forward.1}
  #allocation0 [shape = 'u32[]', space=smem, size = 0x4, offset = 0x4, fixed_abs, tag = 'smem constant byte address 0x4 - core index']
  #allocation1 [shape = 'u32[144,128]{1,0:T(1,128)}', space=vmem, size = 0x12000, scoped, tag = 'internal scratch']
  %s0 = inlined_call_operand.vmem [shape: f32[12], index: 0, kind: input, shape index: {}]
  %s1 = inlined_call_operand.vmem [shape: f32[16,128], index: 1, kind: input, shape index: {}]
  %s2 = inlined_call_operand.hbm [shape: f32[16,128], index: 2, kind: output, shape index: {}]
  %s3 = sld [smem:[#allocation0]]
  $region45: #{q_model_multi_qubit_forward.1} parent=0
    _
  %s5 = ssub.s32 1, %s3
  %s6 = scalar_select 0, %s5, %s3
  $region1: #{q_model_multi_qubit_forward.1} parent=0
    #allocation2 [shape = 'u8[512]{0}', space=smem, size = 0x200, scoped, tag = 'input window, operand 0, single buffered']
    #allocation3 [shape = 's32[2]{0}', space=sflag, size = 0x8, scoped, tag = 'scoped memory for q_model_multi_qubit_forward.1']
    #allocation4 [shape = 's32[2]{0}', space=sflag, size = 0x8, scoped, tag = 'scoped memory for q_model_multi_qubit_forward.1']
    #allocation5 [shape = 'u8[8192]{0}', space=vmem, size = 0x2000, scoped, tag = 'output window, operand 0']
    %7 = vsyncpa [#allocation4], 0
    %8 = vsyncpa [#allocation3], 0
    %s9 = scalar_lea.sflag [#allocation3], 1
    %10 = vsyncpa %s9, 0
    loop: start=0, step=1, limit=4
    $region2: #{q_model_multi_qubit_forward.1} parent=1 // loop_pre_header
      _
    $region3: #{q_model_multi_qubit_forward.1} parent=1 // loop_header
      %s12 = sphi 0, %s16
      %p13 = scmp.ge.s32.totalorder %s12, 4
      %s20 = sphi 0, %s20
      %s22 = sphi 0, %s20
      %s23 = sphi 0, %s22
      %s37 = sphi 0, %s23
      %s43 = sphi 0, %s45
      %s46 = sphi 0, %s43
      %s47 = sphi 0, %s46
      %s63 = sphi 0, %s47
      %s69 = sphi 0, %s71
      %s72 = sphi 0, %s69
      %s73 = sphi 0, %s72
      %s89 = sphi 0, %s73
    $region4: #{q_model_multi_qubit_forward.1} parent=1 // loop_header_branch
      %15 = sbr.rel (%p13) target = $region8
    $region5: #{q_model_multi_qubit_forward.1} parent=1 // loop_body
      %s17 = ssub.s32 %s12, 1
      %s18 = ssub.s32 %s12, 2
      %s19 = sadd.s32 %s12, 1
      %s21 = sadd.s32 %s20, 1
      %p24 = scmp.eq.s32.totalorder %s12, 1
      %p25 = scmp.ne.s32.totalorder %s20, %s22
      %p26 = scmp.eq.s32.totalorder %s12, 0
      %p27 = por %p25, %p26
      %p28 = scmp.ne.s32.totalorder %s20, %s22
      %p29 = scmp.eq.s32.totalorder %s17, 1
      %p30 = por %p28, %p29
      %p31 = scmp.ne.s32.totalorder %s22, %s23
      %p32 = scmp.eq.s32.totalorder %s17, 0
      %p33 = por %p31, %p32
      %p34 = scmp.ne.s32.totalorder %s22, %s23
      %p35 = scmp.eq.s32.totalorder %s18, 1
      %p36 = por %p34, %p35
      %p38 = scmp.ne.s32.totalorder %s23, %s37
      %p39 = scmp.eq.s32.totalorder %s18, 0
      %p40 = por %p38, %p39
      %s41 = ssub.s32 %s12, %s19
      %p42 = scmp.eq.s32.totalorder %s41, 0
      %s44 = sadd.s32 %s43, 1
      %s45 = scalar_select %p42, %s43, %s44
      %p48 = pneg %p42
      %p49 = scmp.eq.s32.totalorder %s12, 1
      %p50 = por %p48, %p49
      %p51 = scmp.ne.s32.totalorder %s43, %s46
      %p52 = scmp.eq.s32.totalorder %s12, 0
      %p53 = por %p51, %p52
      %p54 = scmp.ne.s32.totalorder %s43, %s46
      %p55 = scmp.eq.s32.totalorder %s17, 1
      %p56 = por %p54, %p55
      %p57 = scmp.ne.s32.totalorder %s46, %s47
      %p58 = scmp.eq.s32.totalorder %s17, 0
      %p59 = por %p57, %p58
      %p60 = scmp.ne.s32.totalorder %s46, %s47
      %p61 = scmp.eq.s32.totalorder %s18, 1
      %p62 = por %p60, %p61
      %p64 = scmp.ne.s32.totalorder %s47, %s63
      %p65 = scmp.eq.s32.totalorder %s18, 0
      %p66 = por %p64, %p65
      %s67 = ssub.s32 %s12, %s19
      %p68 = scmp.eq.s32.totalorder %s67, 0
      %s70 = sadd.s32 %s69, 1
      %s71 = scalar_select %p68, %s69, %s70
      %p74 = pneg %p68
      %p75 = scmp.eq.s32.totalorder %s12, 1
      %p76 = por %p74, %p75
      %p77 = scmp.ne.s32.totalorder %s69, %s72
      %p78 = scmp.eq.s32.totalorder %s12, 0
      %p79 = por %p77, %p78
      %p80 = scmp.ne.s32.totalorder %s69, %s72
      %p81 = scmp.eq.s32.totalorder %s17, 1
      %p82 = por %p80, %p81
      %p83 = scmp.ne.s32.totalorder %s72, %s73
      %p84 = scmp.eq.s32.totalorder %s17, 0
      %p85 = por %p83, %p84
      %p86 = scmp.ne.s32.totalorder %s72, %s73
      %p87 = scmp.eq.s32.totalorder %s18, 1
      %p88 = por %p86, %p87
      %p90 = scmp.ne.s32.totalorder %s73, %s89
      %p91 = scmp.eq.s32.totalorder %s18, 0
      %p92 = por %p90, %p91
      %p93 = scmp.le.s32.totalorder 1, %s12
      %p94 = scmp.lt.s32.totalorder %s12, 3
      %p95 = pnand %p93, %p94
      %p96 = pneg %p95
      // Predicated region
      $region9: #{q_model_multi_qubit_forward.1} parent=5 // pred_check
        _
      $region10: #{q_model_multi_qubit_forward.1} parent=5 // pred_check_branch
        %98 = sbr.rel (%p95) target = $region12
      $region11: #{q_model_multi_qubit_forward.1} parent=5 // pred_region
        %s99 = ssub.s32 %s12, 1
        // Predicated region
        $region13: #{q_model_multi_qubit_forward.1} parent=11 // pred_check
          %p100 = pneg %p33
        $region14: #{q_model_multi_qubit_forward.1} parent=11 // pred_check_branch
          %102 = sbr.rel (%p100) target = $region16
        $region15: #{q_model_multi_qubit_forward.1} parent=11 // pred_region
          %s104 = ssub.s32 16, 16
          %105 = vsyncadd [#allocation4], %s104
          %s107 = sshll.u32 %s0, 4
          %s108 = int_to_ptr.vmem [resolvable:$true] %s107
          %110 = dma.vmem_to_smem %s108, 16, [#allocation2], [#allocation4]
        $region16: #{q_model_multi_qubit_forward.1} parent=11 // pred_fallthru
          _
      $region12: #{q_model_multi_qubit_forward.1} parent=5 // pred_fallthru
        _
      %p111 = scmp.lt.s32.totalorder %s12, 2
      // Predicated region
      $region17: #{q_model_multi_qubit_forward.1} parent=5 // pred_check
        %p112 = pneg %p111
      $region18: #{q_model_multi_qubit_forward.1} parent=5 // pred_check_branch
        %114 = sbr.rel (%p112) target = $region20
      $region19: #{q_model_multi_qubit_forward.1} parent=5 // pred_region
        // Predicated region
        $region21: #{q_model_multi_qubit_forward.1} parent=19 // pred_check
          %p115 = pneg %p53
        $region22: #{q_model_multi_qubit_forward.1} parent=19 // pred_check_branch
          %117 = sbr.rel (%p115) target = $region24
        $region23: #{q_model_multi_qubit_forward.1} parent=19 // pred_region
          %p118 = scmp.lt.s32.totalorder %s12, 1
          %s119 = scalar_select %p118, %s12, 1
          %s120 = smul.addr %s119, 8
          %s121 = scalar_lea.vmem %s1, %s120
        $region24: #{q_model_multi_qubit_forward.1} parent=19 // pred_fallthru
          _
      $region20: #{q_model_multi_qubit_forward.1} parent=5 // pred_fallthru
        _
      %p122 = scmp.le.s32.totalorder 1, %s12
      %p123 = scmp.lt.s32.totalorder %s12, 3
      %p124 = pnand %p122, %p123
      %p125 = pneg %p124
      // Predicated region
      $region25: #{q_model_multi_qubit_forward.1} parent=5 // pred_check
        _
      $region26: #{q_model_multi_qubit_forward.1} parent=5 // pred_check_branch
        %127 = sbr.rel (%p124) target = $region28
      $region27: #{q_model_multi_qubit_forward.1} parent=5 // pred_region
        %s128 = ssub.s32 %s12, 1
        // Predicated region
        $region29: #{q_model_multi_qubit_forward.1} parent=27 // pred_check
          %p129 = pneg %p33
        $region30: #{q_model_multi_qubit_forward.1} parent=27 // pred_check_branch
          %131 = sbr.rel (%p129) target = $region32
        $region31: #{q_model_multi_qubit_forward.1} parent=27 // pred_region
          %132 = dma.done [#allocation4], 16
        $region32: #{q_model_multi_qubit_forward.1} parent=27 // pred_fallthru
          _
        %133 = sfence
        %p134 = pneg %p33
        %p135 = pneg %p30
        %p136 = scmp.lt.s32.totalorder %s17, 1
        %s137 = scalar_select %p136, %s17, 1
        %s138 = smul.addr %s137, 8
        %s139 = scalar_lea.vmem %s1, %s138
        %p140 = pneg %p59
        %p141 = pneg %p56
        %p142 = pneg %p85
        %p143 = pneg %p82
        %s144 = sand.u32 %s72, 1
        %s145 = scalar_lea.sflag [#allocation3], %s144
        %s146 = sand.u32 %s72, 1
        %s147 = smul.addr %s146, 8
        %s148 = scalar_lea.vmem [#allocation5], %s147
        %p149 = scmp.lt.s32.totalorder %s17, 1
        %s150 = scalar_select %p149, %s17, 1
        %s151 = smul.addr %s150, 8
        %s152 = scalar_lea.vmem %s1, %s151
        %v153 = vld [vmem:[%s152] sm:$0xff]
        %v154 = vmul.f32 %v153, 0.5
        %v155 = vand.u32 2147483647, %v154
        %vm156 = vcmp.le.f32.partialorder %v155, 0.7853982
        %vm157 = vcmp.lt.s32.totalorder %v154, 0
        %v158 = vand.u32 %v154, 2139095040
        %v159 = vshrl.u32 %v158, 23
        %v160 = vsub.s32 %v159, 127
        %v161 = vand.u32 2147483647, %v154
        %v162 = vand.u32 %v161, 8388607
        %v163 = vor.u32 %v162, 8388608
        %v164 = vsub.s32 0, %v163
        %v165 = vadd.s32 %v160, 1
        %vm166 = vcmp.gt.s32.totalorder %v165, 0
        %v167 = vsel %vm166, %v165, 0
        %v168 = vshrl.u32 %v167, 5
        %v169 = vand.u32 %v167, 31
        %v170 = vsub.s32 32, %v169
        %v171 = vshrl.u32 683565275, %v170
        %v172 = vshll.u32 683565275, %v169
        %v173 = vshrl.u32 2475754826, %v170
        %v174 = vor.u32 %v172, %v173
        %v175 = vshll.u32 2475754826, %v169
        %v176 = vshrl.u32 2131351028, %v170
        %v177 = vor.u32 %v175, %v176
        %v178 = vshll.u32 2131351028, %v169
        %v179 = vshrl.u32 2102212464, %v170
        %v180 = vor.u32 %v178, %v179
        %v181 = vshll.u32 2102212464, %v169
        %v182 = vshrl.u32 920167782, %v170
        %v183 = vor.u32 %v181, %v182
        %v184 = vshll.u32 920167782, %v169
        %v185 = vshrl.u32 1326507024, %v170
        %v186 = vor.u32 %v184, %v185
        %vm187 = vcmp.lt.s32.totalorder %v168, 1
        %vm188 = vcmp.lt.s32.totalorder %v168, 2
        %vm189 = vcmp.lt.s32.totalorder %v168, 3
        %vm190 = vcmp.lt.s32.totalorder %v168, 4
        %v191 = vsel %vm187, %v171, %v174
        %v192 = vsel %vm190, %v180, 2102212464
        %v193 = vsel %vm189, %v177, %v192
        %v194 = vsel %vm188, %v191, %v193
        %v195 = vsel %vm187, %v174, %v177
        %v196 = vsel %vm190, %v183, 920167782
        %v197 = vsel %vm189, %v180, %v196
        %v198 = vsel %vm188, %v195, %v197
        %v199 = vsel %vm187, %v177, %v180
        %v200 = vsel %vm190, %v186, 1326507024
        %v201 = vsel %vm189, %v183, %v200
        %v202 = vsel %vm188, %v199, %v201
        %v203 = vshll.u32 %v163, 8
        %v204 = vmul.u32.u64.compose %v203, %v202
        %v205 = vextract.low.u32 %v204
        %v206 = vextract.high.u32 %v204
        %v207 = vmul.u32.u64.compose %v203, %v198
        %v208 = vextract.low.u32 %v207
        %v209 = vextract.high.u32 %v207
        %v210 = vmul.u32 %v203, %v194
        %v211 = vadd.s32 %v206, %v208
        %vm212 = vc.u32 %v206, %v208
        %v213 = vadd.s32 %v209, 1
        %v214 = vsel %vm212, %v213, %v209
        %v215 = vadd.s32 %v210, %v214
        %v216 = vadd.s32 %v215, 536870912
        %v217 = vshrl.u32 %v216, 30
        %v218 = vshll.u32 %v217, 30
        %v219 = vsub.s32 %v215, %v218
        %vm220 = vcmp.lt.s32.totalorder %v219, 0
        %v221 = vsub.s32 0, %v219
        %v222 = vsel %vm220, %v221, %v219
        %v223 = vclz %v222
        %v224 = vsub.s32 %v223, 2
        %vm225 = vcmp.gt.s32.totalorder 0, %v224
        %v226 = vsel %vm225, 0, %v224
        %v227 = vsub.s32 32, %v226
        %v228 = vshll.u32 %v219, %v226
        %v229 = vshrl.u32 %v211, %v227
        %v230 = vor.u32 %v228, %v229
        %v231 = vsub.s32 4294967266, %v226
        %v232 = vadd.s32 %v231, 127
        %v233 = vshll.u32 %v232, 23
        %v234 = vor.u32 4788187, %v233
        %v235 = vand.u32 2147483647, %v234
        %v237 = vcvt.s32.f32 %v230
        %v238 = vmul.f32 %v237, %v235
        %v239 = vxor.u32 %v238, 2147483648
        %v240 = vsel %vm157, %v239, %v238
        %v241 = vsub.s32 4, %v217
        %v242 = vsel %vm157, %v241, %v217
        %v243 = vsel %vm156, %v154, %v240
        %v244 = vsel %vm156, 0, %v242
        %v245 = vcosq.f32.pop %v243
        %v246 = vsinq.f32.pop %v243
        %vm247 = vweird.f32 %v154
        %v248 = vand.u32 %v244, 3
        %vm249 = vcmp.lt.s32.totalorder %v248, 2
        %vm250 = vcmp.eq.s32.totalorder %v248, 0
        %v251 = vxor.u32 %v246, 2147483648
        %v252 = vsel %vm250, %v245, %v251
        %vm253 = vcmp.eq.s32.totalorder %v248, 2
        %v254 = vxor.u32 %v245, 2147483648
        %v255 = vsel %vm253, %v254, %v246
        %v256 = vsel %vm249, %v252, %v255
        %v257 = vsel %vm247, nan, %v256
        %v258 = vand.u32 2147483647, %v154
        %vm259 = vcmp.le.f32.partialorder %v258, 0.7853982
        %vm260 = vcmp.lt.s32.totalorder %v154, 0
        %v261 = vand.u32 %v154, 2139095040
        %v262 = vshrl.u32 %v261, 23
        %v263 = vsub.s32 %v262, 127
        %v264 = vand.u32 2147483647, %v154
        %v265 = vand.u32 %v264, 8388607
        %v266 = vor.u32 %v265, 8388608
        %v267 = vsub.s32 0, %v266
        %v268 = vadd.s32 %v263, 1
        %vm269 = vcmp.gt.s32.totalorder %v268, 0
        %v270 = vsel %vm269, %v268, 0
        %v271 = vshrl.u32 %v270, 5
        %v272 = vand.u32 %v270, 31
        %v273 = vsub.s32 32, %v272
        %v274 = vshrl.u32 683565275, %v273
        %v275 = vshll.u32 683565275, %v272
        %v276 = vshrl.u32 2475754826, %v273
        %v277 = vor.u32 %v275, %v276
        %v278 = vshll.u32 2475754826, %v272
        %v279 = vshrl.u32 2131351028, %v273
        %v280 = vor.u32 %v278, %v279
        %v281 = vshll.u32 2131351028, %v272
        %v282 = vshrl.u32 2102212464, %v273
        %v283 = vor.u32 %v281, %v282
        %v284 = vshll.u32 2102212464, %v272
        %v285 = vshrl.u32 920167782, %v273
        %v286 = vor.u32 %v284, %v285
        %v287 = vshll.u32 920167782, %v272
        %v288 = vshrl.u32 1326507024, %v273
        %v289 = vor.u32 %v287, %v288
        %vm290 = vcmp.lt.s32.totalorder %v271, 1
        %vm291 = vcmp.lt.s32.totalorder %v271, 2
        %vm292 = vcmp.lt.s32.totalorder %v271, 3
        %vm293 = vcmp.lt.s32.totalorder %v271, 4
        %v294 = vsel %vm290, %v274, %v277
        %v295 = vsel %vm293, %v283, 2102212464
        %v296 = vsel %vm292, %v280, %v295
        %v297 = vsel %vm291, %v294, %v296
        %v298 = vsel %vm290, %v277, %v280
        %v299 = vsel %vm293, %v286, 920167782
        %v300 = vsel %vm292, %v283, %v299
        %v301 = vsel %vm291, %v298, %v300
        %v302 = vsel %vm290, %v280, %v283
        %v303 = vsel %vm293, %v289, 1326507024
        %v304 = vsel %vm292, %v286, %v303
        %v305 = vsel %vm291, %v302, %v304
        %v306 = vshll.u32 %v266, 8
        %v307 = vmul.u32.u64.compose %v306, %v305
        %v308 = vextract.low.u32 %v307
        %v309 = vextract.high.u32 %v307
        %v310 = vmul.u32.u64.compose %v306, %v301
        %v311 = vextract.low.u32 %v310
        %v312 = vextract.high.u32 %v310
        %v313 = vmul.u32 %v306, %v297
        %v314 = vadd.s32 %v309, %v311
        %vm315 = vc.u32 %v309, %v311
        %v316 = vadd.s32 %v312, 1
        %v317 = vsel %vm315, %v316, %v312
        %v318 = vadd.s32 %v313, %v317
        %v319 = vadd.s32 %v318, 536870912
        %v320 = vshrl.u32 %v319, 30
        %v321 = vshll.u32 %v320, 30
        %v322 = vsub.s32 %v318, %v321
        %vm323 = vcmp.lt.s32.totalorder %v322, 0
        %v324 = vsub.s32 0, %v322
        %v325 = vsel %vm323, %v324, %v322
        %v326 = vclz %v325
        %v327 = vsub.s32 %v326, 2
        %vm328 = vcmp.gt.s32.totalorder 0, %v327
        %v329 = vsel %vm328, 0, %v327
        %v330 = vsub.s32 32, %v329
        %v331 = vshll.u32 %v322, %v329
        %v332 = vshrl.u32 %v314, %v330
        %v333 = vor.u32 %v331, %v332
        %v334 = vsub.s32 4294967266, %v329
        %v335 = vadd.s32 %v334, 127
        %v336 = vshll.u32 %v335, 23
        %v337 = vor.u32 4788187, %v336
        %v338 = vand.u32 2147483647, %v337
        %v340 = vcvt.s32.f32 %v333
        %v341 = vmul.f32 %v340, %v338
        %v342 = vxor.u32 %v341, 2147483648
        %v343 = vsel %vm260, %v342, %v341
        %v344 = vsub.s32 4, %v320
        %v345 = vsel %vm260, %v344, %v320
        %v346 = vsel %vm259, %v154, %v343
        %v347 = vsel %vm259, 0, %v345
        %v348 = vcosq.f32.pop %v346
        %v349 = vsinq.f32.pop %v346
        %vm350 = vweird.f32 %v154
        %v351 = vadd.s32 %v347, 3
        %v352 = vand.u32 %v351, 3
        %vm353 = vcmp.lt.s32.totalorder %v352, 2
        %vm354 = vcmp.eq.s32.totalorder %v352, 0
        %v355 = vxor.u32 %v349, 2147483648
        %v356 = vsel %vm354, %v348, %v355
        %vm357 = vcmp.eq.s32.totalorder %v352, 2
        %v358 = vxor.u32 %v348, 2147483648
        %v359 = vsel %vm357, %v358, %v349
        %v360 = vsel %vm353, %v356, %v359
        %v361 = vsel %vm350, nan, %v360
        %s362 = sld [smem:[#allocation2]]
        %s363 = sld [smem:[#allocation2 + $0x1]]
        %s364 = sld [smem:[#allocation2 + $0x2]]
        %s365 = sld [smem:[#allocation2 + $0x3]]
        %v366 = vstv %s362
        %v367 = vmul.f32 %v366, %v257
        %v368 = vstv %s364
        %v369 = vmul.f32 %v368, %v361
        %v370 = vsub.f32 %v367, %v369
        %v371 = vstv %s363
        %v372 = vmul.f32 %v371, %v257
        %v373 = vstv %s365
        %v374 = vmul.f32 %v373, %v361
        %v375 = vadd.f32 %v372, %v374
        %v376 = vmul.f32 %v368, %v257
        %v377 = vmul.f32 %v366, %v361
        %v378 = vadd.f32 %v376, %v377
        %v379 = vmul.f32 %v373, %v257
        %v380 = vmul.f32 %v371, %v361
        %v381 = vsub.f32 %v379, %v380
        %v382 = vmul.f32 %v257, %v370
        %v383 = vmul.f32 %v361, %v378
        %v384 = vsub.f32 %v382, %v383
        %v385 = vmul.f32 %v257, %v375
        %v386 = vmul.f32 %v361, %v381
        %v387 = vsub.f32 %v385, %v386
        %v388 = vmul.f32 %v361, %v370
        %v389 = vmul.f32 %v257, %v378
        %v390 = vadd.f32 %v388, %v389
        %v391 = vmul.f32 %v361, %v375
        %v392 = vmul.f32 %v257, %v381
        %v393 = vadd.f32 %v391, %v392
        %s394 = sld [smem:[#allocation2 + $0x4]]
        %s395 = sld [smem:[#allocation2 + $0x5]]
        %s396 = sld [smem:[#allocation2 + $0x6]]
        %s397 = sld [smem:[#allocation2 + $0x7]]
        %v398 = vstv %s394
        %v399 = vmul.f32 %v398, %v384
        %v400 = vstv %s395
        %v401 = vmul.f32 %v400, %v387
        %v402 = vsub.f32 %v399, %v401
        %v403 = vstv %s396
        %v404 = vmul.f32 %v403, %v390
        %v405 = vsub.f32 %v402, %v404
        %v406 = vstv %s397
        %v407 = vmul.f32 %v406, %v393
        %v408 = vsub.f32 %v405, %v407
        %v409 = vmul.f32 %v398, %v387
        %v410 = vmul.f32 %v400, %v384
        %v411 = vadd.f32 %v409, %v410
        %v412 = vmul.f32 %v403, %v393
        %v413 = vsub.f32 %v411, %v412
        %v414 = vmul.f32 %v406, %v390
        %v415 = vadd.f32 %v413, %v414
        %v416 = vmul.f32 %v403, %v384
        %v417 = vmul.f32 %v406, %v387
        %v418 = vsub.f32 %v416, %v417
        %v419 = vmul.f32 %v398, %v390
        %v420 = vadd.f32 %v418, %v419
        %v421 = vmul.f32 %v400, %v393
        %v422 = vadd.f32 %v420, %v421
        %v423 = vmul.f32 %v403, %v387
        %v424 = vmul.f32 %v406, %v384
        %v425 = vadd.f32 %v423, %v424
        %v426 = vmul.f32 %v398, %v393
        %v427 = vadd.f32 %v425, %v426
        %v428 = vmul.f32 %v400, %v390
        %v429 = vsub.f32 %v427, %v428
        %v430 = vmul.f32 %v257, %v408
        %v431 = vmul.f32 %v361, %v422
        %v432 = vsub.f32 %v430, %v431
        %v433 = vmul.f32 %v257, %v415
        %v434 = vmul.f32 %v361, %v429
        %v435 = vsub.f32 %v433, %v434
        %v436 = vmul.f32 %v361, %v408
        %v437 = vmul.f32 %v257, %v422
        %v438 = vadd.f32 %v436, %v437
        %v439 = vmul.f32 %v361, %v415
        %v440 = vmul.f32 %v257, %v429
        %v441 = vadd.f32 %v439, %v440
        %s442 = sld [smem:[#allocation2 + $0x8]]
        %s443 = sld [smem:[#allocation2 + $0x9]]
        %s444 = sld [smem:[#allocation2 + $0xa]]
        %s445 = sld [smem:[#allocation2 + $0xb]]
        %v446 = vstv %s442
        %v447 = vmul.f32 %v446, %v432
        %v448 = vstv %s443
        %v449 = vmul.f32 %v448, %v435
        %v450 = vsub.f32 %v447, %v449
        %v451 = vstv %s444
        %v452 = vmul.f32 %v451, %v438
        %v453 = vsub.f32 %v450, %v452
        %v454 = vstv %s445
        %v455 = vmul.f32 %v454, %v441
        %v456 = vsub.f32 %v453, %v455
        %v457 = vmul.f32 %v446, %v435
        %v458 = vmul.f32 %v448, %v432
        %v459 = vadd.f32 %v457, %v458
        %v460 = vmul.f32 %v451, %v441
        %v461 = vsub.f32 %v459, %v460
        %v462 = vmul.f32 %v454, %v438
        %v463 = vadd.f32 %v461, %v462
        %v464 = vmul.f32 %v456, %v456
        %v465 = vmul.f32 %v463, %v463
        %v466 = vadd.f32 %v464, %v465
        %467 = vst [vmem:[%s148] sm:$0xff] %v466
        %s468 = sand.u32 %s72, 1
        %s469 = scalar_lea.sflag [#allocation3], %s468
        %s470 = sand.u32 %s72, 1
        %s471 = smul.addr %s470, 8
        %s472 = scalar_lea.vmem [#allocation5], %s471
        // Predicated region
        $region33: #{q_model_multi_qubit_forward.1} parent=27 // pred_check
          %p473 = pneg %p82
        $region34: #{q_model_multi_qubit_forward.1} parent=27 // pred_check_branch
          %475 = sbr.rel (%p473) target = $region36
        $region35: #{q_model_multi_qubit_forward.1} parent=27 // pred_region
          %s477 = ssub.s32 128, 128
          %478 = vsyncadd %s469, %s477
          %s479 = smul.addr %s17, 128
          %s480 = scalar_lea.hbm %s2, %s479
          %s482 = sshll.u32 %s472, 4
          %s483 = int_to_ptr.vmem [resolvable:$true] %s482
          %485 = dma.vmem_to_hbm [thread:$0]  %s483, 128, %s480, %s469
        $region36: #{q_model_multi_qubit_forward.1} parent=27 // pred_fallthru
          _
      $region28: #{q_model_multi_qubit_forward.1} parent=5 // pred_fallthru
        _
      %p486 = scmp.le.s32.totalorder 2, %s12
      // Predicated region
      $region37: #{q_model_multi_qubit_forward.1} parent=5 // pred_check
        %p487 = pneg %p486
      $region38: #{q_model_multi_qubit_forward.1} parent=5 // pred_check_branch
        %489 = sbr.rel (%p487) target = $region40
      $region39: #{q_model_multi_qubit_forward.1} parent=5 // pred_region
        %s490 = ssub.s32 %s12, 2
        // Predicated region
        $region41: #{q_model_multi_qubit_forward.1} parent=39 // pred_check
          %p491 = pneg %p88
        $region42: #{q_model_multi_qubit_forward.1} parent=39 // pred_check_branch
          %493 = sbr.rel (%p491) target = $region44
        $region43: #{q_model_multi_qubit_forward.1} parent=39 // pred_region
          %s494 = sand.u32 %s73, 1
          %s495 = scalar_lea.sflag [#allocation3], %s494
          %s496 = sand.u32 %s73, 1
          %s497 = smul.addr %s496, 8
          %s498 = scalar_lea.vmem [#allocation5], %s497
          %499 = dma.done %s495, 128
        $region44: #{q_model_multi_qubit_forward.1} parent=39 // pred_fallthru
          _
      $region40: #{q_model_multi_qubit_forward.1} parent=5 // pred_fallthru
        _
    $region6: #{q_model_multi_qubit_forward.1} parent=1 // loop_footer
      %s16 = sadd.s32 1, %s12
    $region7: #{q_model_multi_qubit_forward.1} parent=1 // loop_footer_branch
      %11 = sbr.rel target = $region3
    $region8: #{q_model_multi_qubit_forward.1} parent=1 // loop_exit
      _
    %500 = vsyncpa [#allocation3], 1
    %s501 = scalar_lea.sflag [#allocation3], 1
    %502 = vsyncpa %s501, 1
    %503 = vsyncpa [#allocation4], 1
    %s504 = scalar_lea.sflag [#allocation4], 1
    %505 = vsyncpa %s504, 1

</llo_original>
